<compile_context>
chip_gen: v6e
topology: v6e:2x2x1
jax: 0.10.0
libtpu: 0.0.40
codegen_flags: <defaults>
</compile_context>

<pallas_src>
import jax
import jax.numpy as jnp
from jax.experimental import pallas as pl
from jax.experimental.pallas import tpu as pltpu

HIDDEN = 64           # per-head hidden size (as in the PyTorch module)
LANE = 2 * HIDDEN     # fused actor+critic width = 128 = one vreg lane width


def policy_fused_kernel(x_ref, w1_ref, w2_ref, w3_ref, b_ref, out_ref):
    """Fused actor+critic MLP on one batch tile: three 128-wide MXU matmuls.

    Weights may be bf16 (native MXU dtype) or f32; accumulation, bias adds and
    tanh stay in f32.
    """
    wdt = w1_ref.dtype
    x = x_ref[...].astype(wdt)
    b = b_ref[...]  # [3, 128] f32 packed biases (layer1, layer2, layer3)

    h = jnp.tanh(
        jnp.dot(x, w1_ref[...], preferred_element_type=jnp.float32) + b[0:1, :]
    )
    h = jnp.tanh(
        jnp.dot(h.astype(wdt), w2_ref[...], preferred_element_type=jnp.float32)
        + b[1:2, :]
    )
    out = (
        jnp.dot(h.astype(wdt), w3_ref[...], preferred_element_type=jnp.float32)
        + b[2:3, :]
    )
    out_ref[...] = out.astype(out_ref.dtype)


def init_policy_params(key, state_space, action_space, hidden=HIDDEN):
    """Mirror Policy.init_weights(): weights ~ N(0,1), biases = 0, sigma = 0.5.

    Weights are stored transposed vs. PyTorch, i.e. [in, out].
    """
    ks = jax.random.split(key, 6)

    def lin(k, fan_in, fan_out):
        w = jax.random.normal(k, (fan_in, fan_out), dtype=jnp.float32)
        b = jnp.zeros((1, fan_out), dtype=jnp.float32)
        return w, b

    w1a, b1a = lin(ks[0], state_space, hidden)
    w2a, b2a = lin(ks[1], hidden, hidden)
    w3a, b3a = lin(ks[2], hidden, action_space)
    w1c, b1c = lin(ks[3], state_space, hidden)
    w2c, b2c = lin(ks[4], hidden, hidden)
    w3c, b3c = lin(ks[5], hidden, 1)
    sigma = jnp.full((1, action_space), 0.5, dtype=jnp.float32)
    return dict(
        w1a=w1a, b1a=b1a, w2a=w2a, b2a=b2a, w3a=w3a, b3a=b3a, sigma=sigma,
        w1c=w1c, b1c=b1c, w2c=w2c, b2c=b2c, w3c=w3c, b3c=b3c,
    )


def pack_policy_params(params, weight_dtype=jnp.float32):
    """One-time host-side packing of actor+critic weights into lane-dense blocks.

    `weight_dtype=jnp.bfloat16` stores the matmul operands in the MXU-native
    dtype (3x faster multiply passes, half the weight DMA); biases stay f32.
    NOTE: sigma = softplus(sigma_param) is baked in here; re-pack after any
    parameter update.
    """
    S, H = params["w1a"].shape
    A = params["w3a"].shape[1]
    assert 2 * H == LANE, "packed hidden width must be 128"
    assert A + 1 <= LANE, "action_space + 1 must fit in the 128-lane output slab"

    # Layer 1: [S, 128] = [w1a | w1c]
    w1 = jnp.concatenate([params["w1a"], params["w1c"]], axis=1)

    # Layer 2: [128, 128] block-diagonal (actor top-left, critic bottom-right)
    w2 = jnp.zeros((LANE, LANE), jnp.float32)
    w2 = w2.at[:H, :H].set(params["w2a"]).at[H:, H:].set(params["w2c"])

    # Layer 3: [128, 128]; actor hidden -> mean cols [0:A], critic hidden -> col A
    w3 = jnp.zeros((LANE, LANE), jnp.float32)
    w3 = w3.at[:H, :A].set(params["w3a"]).at[H:, A:A + 1].set(params["w3c"])

    # Packed biases [3, 128] (kept f32)
    b = jnp.zeros((3, LANE), jnp.float32)
    b = b.at[0, :H].set(params["b1a"][0]).at[0, H:].set(params["b1c"][0])
    b = b.at[1, :H].set(params["b2a"][0]).at[1, H:].set(params["b2c"][0])
    b = b.at[2, :A].set(params["b3a"][0]).at[2, A].set(params["b3c"][0, 0])

    # sigma = softplus(sigma_param): x-independent, computed once here.
    sigma = jax.nn.softplus(params["sigma"]).reshape(-1)

    return dict(
        w1=w1.astype(weight_dtype),
        w2=w2.astype(weight_dtype),
        w3=w3.astype(weight_dtype),
        b=b, sigma=sigma, action_space=int(A),
    )


def policy_forward(x, packed, *, tile_b=2048, grid_threshold=1024,
                   out_dtype=jnp.float32):
    """Returns (action_mean [B,A], sigma [A], value [B]) — Normal(mean, sigma)
    parameters plus value.squeeze(-1), matching the PyTorch forward."""
    B, S = x.shape
    A = packed["action_space"]
    weights = (packed["w1"], packed["w2"], packed["w3"], packed["b"])

    if B <= grid_threshold:
        # --- Small-B path: single invocation, no grid --------------------
        # (at B ~ O(10) the whole forward is one step; a grid only adds
        #  ~0.35 us/step overhead and pipeline priming with nothing to hide).
        B_pad = max(8, ((B + 7) // 8) * 8)
        if B_pad != B:
            x = jnp.pad(x, ((0, B_pad - B), (0, 0)))
        vmem = pl.BlockSpec(memory_space=pltpu.MemorySpace.VMEM)
        out = pl.pallas_call(
            policy_fused_kernel,
            out_shape=jax.ShapeDtypeStruct((B_pad, LANE), out_dtype),
            in_specs=[vmem] * 5,
            out_specs=vmem,
        )(x, *weights)
    else:
        # --- Rollout-scale path: 1-D "parallel" batch grid ----------------
        # Weights/biases use constant index_maps (DMA'd once, VMEM-resident);
        # x and out are blocked along the batch and double-buffered by Pallas
        # under the matmuls.  The "parallel" axis shards grid steps across
        # both TensorCores on v7x.
        tile_b = max(8, (min(tile_b, ((B + 7) // 8) * 8) // 8) * 8)
        B_pad = ((B + tile_b - 1) // tile_b) * tile_b
        if B_pad != B:
            x = jnp.pad(x, ((0, B_pad - B), (0, 0)))
        grid = (B_pad // tile_b,)
        out = pl.pallas_call(
            policy_fused_kernel,
            out_shape=jax.ShapeDtypeStruct((B_pad, LANE), out_dtype),
            grid=grid,
            in_specs=[
                pl.BlockSpec((tile_b, S), lambda i: (i, 0)),      # x tile
                pl.BlockSpec((S, LANE), lambda i: (0, 0)),        # w1 (resident)
                pl.BlockSpec((LANE, LANE), lambda i: (0, 0)),     # w2 (resident)
                pl.BlockSpec((LANE, LANE), lambda i: (0, 0)),     # w3 (resident)
                pl.BlockSpec((3, LANE), lambda i: (0, 0)),        # biases
            ],
            out_specs=pl.BlockSpec((tile_b, LANE), lambda i: (i, 0)),
            compiler_params=pltpu.CompilerParams(
                dimension_semantics=("parallel",),
            ),
        )(x, *weights)

    mean = out[:B, :A].astype(jnp.float32)
    value = out[:B, A].astype(jnp.float32)
    return mean, packed["sigma"], value


def policy_forward_ref(x, params):
    """Pure-JAX f32 reference (unfused, unpacked) for correctness checking."""
    h = jnp.tanh(x @ params["w1a"] + params["b1a"])
    h = jnp.tanh(h @ params["w2a"] + params["b2a"])
    mean = h @ params["w3a"] + params["b3a"]
    sigma = jax.nn.softplus(params["sigma"]).reshape(-1)
    hv = jnp.tanh(x @ params["w1c"] + params["b1c"])
    hv = jnp.tanh(hv @ params["w2c"] + params["b2c"])
    value = (hv @ params["w3c"] + params["b3c"])[:, 0]
    return mean, sigma, value


def policy_forward_ref_packed(x, packed):
    """Pure-JAX reference that mimics the kernel's numerics with the packed
    (possibly bf16) weights — used to validate reduced-precision variants."""
    wdt = packed["w1"].dtype
    w1 = packed["w1"].astype(jnp.float32)
    w2 = packed["w2"].astype(jnp.float32)
    w3 = packed["w3"].astype(jnp.float32)
    b = packed["b"]
    A = packed["action_space"]
    h = jnp.tanh(x.astype(wdt).astype(jnp.float32) @ w1 + b[0:1, :])
    h = jnp.tanh(h.astype(wdt).astype(jnp.float32) @ w2 + b[1:2, :])
    out = h.astype(wdt).astype(jnp.float32) @ w3 + b[2:3, :]
    return out[:, :A], packed["sigma"], out[:, A]


if __name__ == "__main__":
    key = jax.random.PRNGKey(0)
    k_param, k_x, k_xl = jax.random.split(key, 3)

    state_space = 4
    action_space = 2

    params = init_policy_params(k_param, state_space, action_space, HIDDEN)

    # ---- 1) Small-batch path (f32, no grid) — action-selection regime -----
    packed_f32 = pack_policy_params(params)
    x_small = jax.random.normal(k_x, (8, state_space), dtype=jnp.float32)
    mean, sigma, value = policy_forward(x_small, packed_f32)
    jax.block_until_ready((mean, sigma, value))
    mean_r, sigma_r, value_r = policy_forward_ref(x_small, params)
    assert mean.shape == (8, action_space)
    assert sigma.shape == (action_space,)
    assert value.shape == (8,)
    assert jnp.allclose(mean, mean_r, atol=1e-4, rtol=1e-4)
    assert jnp.allclose(sigma, sigma_r, atol=1e-5, rtol=1e-5)
    assert jnp.allclose(value, value_r, atol=1e-4, rtol=1e-4)

    # ---- 2) Gridded rollout path (f32 weights), non-multiple batch --------
    x_big = jax.random.normal(k_xl, (500, state_space), dtype=jnp.float32)
    mean, sigma, value = policy_forward(
        x_big, packed_f32, tile_b=128, grid_threshold=0)
    jax.block_until_ready((mean, sigma, value))
    mean_r, sigma_r, value_r = policy_forward_ref(x_big, params)
    assert mean.shape == (500, action_space) and value.shape == (500,)
    assert jnp.allclose(mean, mean_r, atol=1e-4, rtol=1e-4)
    assert jnp.allclose(value, value_r, atol=1e-4, rtol=1e-4)

    # ---- 3) Gridded rollout path with bf16 MXU weights + bf16 output slab -
    packed_bf16 = pack_policy_params(params, weight_dtype=jnp.bfloat16)
    mean, sigma, value = policy_forward(
        x_big, packed_bf16, tile_b=128, grid_threshold=0,
        out_dtype=jnp.bfloat16)
    jax.block_until_ready((mean, sigma, value))
    mean_p, _, value_p = policy_forward_ref_packed(x_big, packed_bf16)
    assert jnp.allclose(mean, mean_p, atol=2e-2, rtol=2e-2)
    assert jnp.allclose(value, value_p, atol=2e-2, rtol=2e-2)

    print("KERNEL_OK")
</pallas_src>

<mosaic_0001>
module attributes {stable_mosaic.version = 11 : i64} {
  func.func @policy_fused_kernel(%arg0: memref<8x4xf32, #tpu.memory_space<vmem>>, %arg1: memref<4x128xf32, #tpu.memory_space<vmem>>, %arg2: memref<128x128xf32, #tpu.memory_space<vmem>>, %arg3: memref<128x128xf32, #tpu.memory_space<vmem>>, %arg4: memref<3x128xf32, #tpu.memory_space<vmem>>, %arg5: memref<8x128xf32, #tpu.memory_space<vmem>>) attributes {dimension_semantics = [], scalar_prefetch = 0 : i64, scratch_operands = 0 : i64, tpu.core_type = #tpu.core_type<tc>} {
    %c0 = arith.constant 0 : index
    %c0_0 = arith.constant 0 : index
    %0 = vector.load %arg0[%c0, %c0_0] : memref<8x4xf32, #tpu.memory_space<vmem>>, vector<8x4xf32>
    %c0_1 = arith.constant 0 : index
    %c0_2 = arith.constant 0 : index
    %1 = vector.load %arg4[%c0_1, %c0_2] : memref<3x128xf32, #tpu.memory_space<vmem>>, vector<3x128xf32>
    %c0_3 = arith.constant 0 : index
    %c0_4 = arith.constant 0 : index
    %2 = vector.load %arg1[%c0_3, %c0_4] : memref<4x128xf32, #tpu.memory_space<vmem>>, vector<4x128xf32>
    %cst = arith.constant dense<0.000000e+00> : vector<8x128xf32>
    %3 = tpu.matmul %0, %2, %cst {dimension_numbers = #tpu.dot_dimension_numbers<[1], [0], [0], [1], [0, 0, 1, 1], [], []>} : vector<8x4xf32>, vector<4x128xf32>, vector<8x128xf32> -> vector<8x128xf32>
    %4 = vector.extract_strided_slice %1 {offsets = [0, 0], sizes = [1, 128], strides = [1, 1]} : vector<3x128xf32> to vector<1x128xf32>
    %5 = vector.broadcast %4 : vector<1x128xf32> to vector<8x128xf32>
    %6 = arith.addf %3, %5 : vector<8x128xf32>
    %7 = math.tanh %6 : vector<8x128xf32>
    %c0_5 = arith.constant 0 : index
    %c0_6 = arith.constant 0 : index
    %8 = vector.load %arg2[%c0_5, %c0_6] : memref<128x128xf32, #tpu.memory_space<vmem>>, vector<128x128xf32>
    %cst_7 = arith.constant dense<0.000000e+00> : vector<8x128xf32>
    %9 = tpu.matmul %7, %8, %cst_7 {dimension_numbers = #tpu.dot_dimension_numbers<[1], [0], [0], [1], [0, 0, 1, 1], [], []>} : vector<8x128xf32>, vector<128x128xf32>, vector<8x128xf32> -> vector<8x128xf32>
    %10 = vector.extract_strided_slice %1 {offsets = [1, 0], sizes = [1, 128], strides = [1, 1]} : vector<3x128xf32> to vector<1x128xf32>
    %11 = vector.broadcast %10 : vector<1x128xf32> to vector<8x128xf32>
    %12 = arith.addf %9, %11 : vector<8x128xf32>
    %13 = math.tanh %12 : vector<8x128xf32>
    %c0_8 = arith.constant 0 : index
    %c0_9 = arith.constant 0 : index
    %14 = vector.load %arg3[%c0_8, %c0_9] : memref<128x128xf32, #tpu.memory_space<vmem>>, vector<128x128xf32>
    %cst_10 = arith.constant dense<0.000000e+00> : vector<8x128xf32>
    %15 = tpu.matmul %13, %14, %cst_10 {dimension_numbers = #tpu.dot_dimension_numbers<[1], [0], [0], [1], [0, 0, 1, 1], [], []>} : vector<8x128xf32>, vector<128x128xf32>, vector<8x128xf32> -> vector<8x128xf32>
    %16 = vector.extract_strided_slice %1 {offsets = [2, 0], sizes = [1, 128], strides = [1, 1]} : vector<3x128xf32> to vector<1x128xf32>
    %17 = vector.broadcast %16 : vector<1x128xf32> to vector<8x128xf32>
    %18 = arith.addf %15, %17 : vector<8x128xf32>
    %c0_11 = arith.constant 0 : index
    %c0_12 = arith.constant 0 : index
    %19 = vector.load %arg5[%c0_11, %c0_12] : memref<8x128xf32, #tpu.memory_space<vmem>>, vector<8x128xf32>
    tpu.vector_store %arg5[%c0_11, %c0_12], %18 {strides = array<i32>} : memref<8x128xf32, #tpu.memory_space<vmem>>, vector<8x128xf32>,
    return
  }
}

</mosaic_0001>

<llo_original>
// kernel: tpu_custom_call.1
$region0: #{tpu_custom_call.1}
  #allocation0 [shape = 'u32[]', space=smem, size = 0x4, offset = 0x4, fixed_abs, tag = 'smem constant byte address 0x4 - core index']
  #allocation1 [shape = 'u32[144,128]{1,0:T(1,128)}', space=vmem, size = 0x12000, scoped, tag = 'internal scratch']
  %s0 = inlined_call_operand.vmem [shape: f32[8,4], index: 0, kind: input, shape index: {}]
  %s1 = inlined_call_operand.vmem [shape: f32[4,128], index: 1, kind: input, shape index: {}]
  %s2 = inlined_call_operand.hbm [shape: f32[128,128], index: 2, kind: input, shape index: {}]
  %s3 = inlined_call_operand.hbm [shape: f32[128,128], index: 3, kind: input, shape index: {}]
  %s4 = inlined_call_operand.vmem [shape: f32[3,128], index: 4, kind: input, shape index: {}]
  %s5 = inlined_call_operand.hbm [shape: f32[8,128], index: 5, kind: output, shape index: {}]
  %s6 = sld [smem:[#allocation0]]
  $region38: #{tpu_custom_call.1} parent=0
    _
  %s8 = ssub.s32 1, %s6
  %s9 = scalar_select 0, %s8, %s6
  $region1: #{tpu_custom_call.1} parent=0
    #allocation2 [shape = 'u8[65536]{0}', space=vmem, size = 0x10000, scoped, tag = 'input window, operand 2, single buffered']
    #allocation3 [shape = 's32[1]{0}', space=sflag, size = 0x4, scoped, tag = 'scoped memory for tpu_custom_call.1']
    #allocation4 [shape = 's32[1]{0}', space=sflag, size = 0x4, scoped, tag = 'scoped memory for tpu_custom_call.1']
    #allocation5 [shape = 'u8[65536]{0}', space=vmem, size = 0x10000, scoped, tag = 'input window, operand 3, single buffered']
    #allocation6 [shape = 's32[1]{0}', space=sflag, size = 0x4, scoped, tag = 'scoped memory for tpu_custom_call.1']
    #allocation7 [shape = 'u8[4096]{0}', space=vmem, size = 0x1000, scoped, tag = 'output window, operand 0, single buffered']
    %10 = vsyncpa [#allocation3], 0
    %11 = vsyncpa [#allocation6], 0
    %12 = vsyncpa [#allocation4], 0
    // Predicated region
    $region2: #{tpu_custom_call.1} parent=1 // pred_check
      _
    $region3: #{tpu_custom_call.1} parent=1 // pred_check_branch
      %14 = sbr.rel (0) target = $region5
    $region4: #{tpu_custom_call.1} parent=1 // pred_region
      _
    $region5: #{tpu_custom_call.1} parent=1 // pred_fallthru
      _
    // Predicated region
    $region6: #{tpu_custom_call.1} parent=1 // pred_check
      _
    $region7: #{tpu_custom_call.1} parent=1 // pred_check_branch
      %16 = sbr.rel (0) target = $region9
    $region8: #{tpu_custom_call.1} parent=1 // pred_region
      _
    $region9: #{tpu_custom_call.1} parent=1 // pred_fallthru
      _
    // Predicated region
    $region10: #{tpu_custom_call.1} parent=1 // pred_check
      _
    $region11: #{tpu_custom_call.1} parent=1 // pred_check_branch
      %18 = sbr.rel (0) target = $region13
    $region12: #{tpu_custom_call.1} parent=1 // pred_region
      %s20 = ssub.s32 2048, 2048
      %21 = vsyncadd [#allocation3], %s20
      %s22 = sshll.u32 [#allocation2], 4
      %s23 = int_to_ptr.vmem [resolvable:$true] %s22
      %28 = dma.hbm_to_vmem [thread:$0]  %s2, 2048, %s23, [#allocation3], 128, 128, 8
    $region13: #{tpu_custom_call.1} parent=1 // pred_fallthru
      _
    // Predicated region
    $region14: #{tpu_custom_call.1} parent=1 // pred_check
      _
    $region15: #{tpu_custom_call.1} parent=1 // pred_check_branch
      %30 = sbr.rel (0) target = $region17
    $region16: #{tpu_custom_call.1} parent=1 // pred_region
      %s32 = ssub.s32 2048, 2048
      %33 = vsyncadd [#allocation6], %s32
      %s34 = sshll.u32 [#allocation5], 4
      %s35 = int_to_ptr.vmem [resolvable:$true] %s34
      %40 = dma.hbm_to_vmem [thread:$0]  %s3, 2048, %s35, [#allocation6], 128, 128, 8
    $region17: #{tpu_custom_call.1} parent=1 // pred_fallthru
      _
    // Predicated region
    $region18: #{tpu_custom_call.1} parent=1 // pred_check
      _
    $region19: #{tpu_custom_call.1} parent=1 // pred_check_branch
      %42 = sbr.rel (0) target = $region21
    $region20: #{tpu_custom_call.1} parent=1 // pred_region
      _
    $region21: #{tpu_custom_call.1} parent=1 // pred_fallthru
      _
    // Predicated region
    $region22: #{tpu_custom_call.1} parent=1 // pred_check
      _
    $region23: #{tpu_custom_call.1} parent=1 // pred_check_branch
      %44 = sbr.rel (0) target = $region25
    $region24: #{tpu_custom_call.1} parent=1 // pred_region
      %45 = dma.done [#allocation3], 2048
    $region25: #{tpu_custom_call.1} parent=1 // pred_fallthru
      _
    // Predicated region
    $region26: #{tpu_custom_call.1} parent=1 // pred_check
      _
    $region27: #{tpu_custom_call.1} parent=1 // pred_check_branch
      %47 = sbr.rel (0) target = $region29
    $region28: #{tpu_custom_call.1} parent=1 // pred_region
      %48 = dma.done [#allocation6], 2048
    $region29: #{tpu_custom_call.1} parent=1 // pred_fallthru
      _
    %v49 = vld [vmem:[%s0] sm:$0xff]
    %v50 = vld [vmem:[%s4] sm:$0x7]
    %v51 = vld [vmem:[%s1] sm:$0xf]
    %v52 = vlaneseq
    %v53 = vshrl.u32 %v52, 7
    %v54 = vsub.s32 0, %v53
    %v55 = vrot.slane %v50, %v54
    %vm56 = vcmask 31744
    %v58 = vsel %vm56, %v49, 0
    %vm60 = vcmask 1043456
    %v62 = vsel %vm60, %v51, 0
    %64 = vmatprep.subr.mxu0 0.0
    %65 = vmatpush1.msra.mxu0 0.0
    %66 = vmatprep.subr.mxu0 0.0
    %67 = vmatpush1.msra.mxu0 0.0
    %68 = vmatprep.subr.mxu0 0.0
    %69 = vmatpush1.msra.mxu0 0.0
    %70 = vmatprep.subr.mxu0 0.0
    %71 = vmatpush1.msra.mxu0 0.0
    %72 = vmatprep.subr.mxu0 0.0
    %73 = vmatpush1.msra.mxu0 0.0
    %74 = vmatprep.subr.mxu0 0.0
    %75 = vmatpush1.msra.mxu0 0.0
    %76 = vmatprep.subr.mxu0 0.0
    %77 = vmatpush1.msra.mxu0 0.0
    %78 = vmatprep.subr.mxu0 0.0
    %79 = vmatpush1.msra.mxu0 0.0
    %80 = vmatprep.subr.mxu0 0.0
    %81 = vmatpush1.msra.mxu0 0.0
    %82 = vmatprep.subr.mxu0 0.0
    %83 = vmatpush1.msra.mxu0 0.0
    %84 = vmatprep.subr.mxu0 0.0
    %85 = vmatpush1.msra.mxu0 0.0
    %86 = vmatprep.subr.mxu0 0.0
    %87 = vmatpush1.msra.mxu0 0.0
    %88 = vmatprep.subr.mxu0 0.0
    %89 = vmatpush1.msra.mxu0 0.0
    %90 = vmatprep.subr.mxu0 0.0
    %91 = vmatpush1.msra.mxu0 0.0
    %92 = vmatprep.subr.mxu0 0.0
    %93 = vmatpush1.msra.mxu0 0.0
    %94 = vmatprep.subr.mxu0 0.0
    %95 = vmatpush1.msra.mxu0 %v62
    %96 = vmatprep.subr.mxu0 0.0
    %97 = vmatpush2.msra.mxu0 0.0
    %98 = vmatprep.subr.mxu0 0.0
    %99 = vmatpush2.msra.mxu0 0.0
    %100 = vmatprep.subr.mxu0 0.0
    %101 = vmatpush2.msra.mxu0 0.0
    %102 = vmatprep.subr.mxu0 0.0
    %103 = vmatpush2.msra.mxu0 0.0
    %104 = vmatprep.subr.mxu0 0.0
    %105 = vmatpush2.msra.mxu0 0.0
    %106 = vmatprep.subr.mxu0 0.0
    %107 = vmatpush2.msra.mxu0 0.0
    %108 = vmatprep.subr.mxu0 0.0
    %109 = vmatpush2.msra.mxu0 0.0
    %110 = vmatprep.subr.mxu0 0.0
    %111 = vmatpush2.msra.mxu0 0.0
    %112 = vmatprep.subr.mxu0 0.0
    %113 = vmatpush2.msra.mxu0 0.0
    %114 = vmatprep.subr.mxu0 0.0
    %115 = vmatpush2.msra.mxu0 0.0
    %116 = vmatprep.subr.mxu0 0.0
    %117 = vmatpush2.msra.mxu0 0.0
    %118 = vmatprep.subr.mxu0 0.0
    %119 = vmatpush2.msra.mxu0 0.0
    %120 = vmatprep.subr.mxu0 0.0
    %121 = vmatpush2.msra.mxu0 0.0
    %122 = vmatprep.subr.mxu0 0.0
    %123 = vmatpush2.msra.mxu0 0.0
    %124 = vmatprep.subr.mxu0 0.0
    %125 = vmatpush2.msra.mxu0 0.0
    %126 = vmatprep.subr.mxu0 0.0
    %127 = vmatpush2.msra.mxu0 0.0
    %128 = vmatprep.mubr.f32.mxu0 0.0
    %129 = vmatmul.mubr.f32.gmra.mxu0 %v58
    %v130 = vpop.f32.mrf.mxu0
    %v131 = vadd.f32 %v55, %v130
    %v132 = vpop.f32.mrf.mxu0
    %133 = vdwg.mxu0
    %v134 = vtanh.pop %v131
    %v135 = vld [vmem:[#allocation2] sm:$0xff]
    %v136 = vld [vmem:[#allocation2 + $0x8] sm:$0xff]
    %v137 = vld [vmem:[#allocation2 + $0x10] sm:$0xff]
    %v138 = vld [vmem:[#allocation2 + $0x18] sm:$0xff]
    %v139 = vld [vmem:[#allocation2 + $0x20] sm:$0xff]
    %v140 = vld [vmem:[#allocation2 + $0x28] sm:$0xff]
    %v141 = vld [vmem:[#allocation2 + $0x30] sm:$0xff]
    %v142 = vld [vmem:[#allocation2 + $0x38] sm:$0xff]
    %v143 = vld [vmem:[#allocation2 + $0x40] sm:$0xff]
    %v144 = vld [vmem:[#allocation2 + $0x48] sm:$0xff]
    %v145 = vld [vmem:[#allocation2 + $0x50] sm:$0xff]
    %v146 = vld [vmem:[#allocation2 + $0x58] sm:$0xff]
    %v147 = vld [vmem:[#allocation2 + $0x60] sm:$0xff]
    %v148 = vld [vmem:[#allocation2 + $0x68] sm:$0xff]
    %v149 = vld [vmem:[#allocation2 + $0x70] sm:$0xff]
    %v150 = vld [vmem:[#allocation2 + $0x78] sm:$0xff]
    %v151 = vlaneseq
    %v152 = vshrl.u32 %v151, 7
    %v153 = vsub.s32 1, %v152
    %v154 = vrot.slane %v50, %v153
    %155 = vmatprep.subr.mxu0 0.0
    %156 = vmatpush1.msra.mxu0 %v150
    %157 = vmatprep.subr.mxu0 0.0
    %158 = vmatpush1.msra.mxu0 %v149
    %159 = vmatprep.subr.mxu0 0.0
    %160 = vmatpush1.msra.mxu0 %v148
    %161 = vmatprep.subr.mxu0 0.0
    %162 = vmatpush1.msra.mxu0 %v147
    %163 = vmatprep.subr.mxu0 0.0
    %164 = vmatpush1.msra.mxu0 %v146
    %165 = vmatprep.subr.mxu0 0.0
    %166 = vmatpush1.msra.mxu0 %v145
    %167 = vmatprep.subr.mxu0 0.0
    %168 = vmatpush1.msra.mxu0 %v144
    %169 = vmatprep.subr.mxu0 0.0
    %170 = vmatpush1.msra.mxu0 %v143
    %171 = vmatprep.subr.mxu0 0.0
    %172 = vmatpush1.msra.mxu0 %v142
    %173 = vmatprep.subr.mxu0 0.0
    %174 = vmatpush1.msra.mxu0 %v141
    %175 = vmatprep.subr.mxu0 0.0
    %176 = vmatpush1.msra.mxu0 %v140
    %177 = vmatprep.subr.mxu0 0.0
    %178 = vmatpush1.msra.mxu0 %v139
    %179 = vmatprep.subr.mxu0 0.0
    %180 = vmatpush1.msra.mxu0 %v138
    %181 = vmatprep.subr.mxu0 0.0
    %182 = vmatpush1.msra.mxu0 %v137
    %183 = vmatprep.subr.mxu0 0.0
    %184 = vmatpush1.msra.mxu0 %v136
    %185 = vmatprep.subr.mxu0 0.0
    %186 = vmatpush1.msra.mxu0 %v135
    %187 = vmatprep.subr.mxu0 0.0
    %188 = vmatpush2.msra.mxu0 0.0
    %189 = vmatprep.subr.mxu0 0.0
    %190 = vmatpush2.msra.mxu0 0.0
    %191 = vmatprep.subr.mxu0 0.0
    %192 = vmatpush2.msra.mxu0 0.0
    %193 = vmatprep.subr.mxu0 0.0
    %194 = vmatpush2.msra.mxu0 0.0
    %195 = vmatprep.subr.mxu0 0.0
    %196 = vmatpush2.msra.mxu0 0.0
    %197 = vmatprep.subr.mxu0 0.0
    %198 = vmatpush2.msra.mxu0 0.0
    %199 = vmatprep.subr.mxu0 0.0
    %200 = vmatpush2.msra.mxu0 0.0
    %201 = vmatprep.subr.mxu0 0.0
    %202 = vmatpush2.msra.mxu0 0.0
    %203 = vmatprep.subr.mxu0 0.0
    %204 = vmatpush2.msra.mxu0 0.0
    %205 = vmatprep.subr.mxu0 0.0
    %206 = vmatpush2.msra.mxu0 0.0
    %207 = vmatprep.subr.mxu0 0.0
    %208 = vmatpush2.msra.mxu0 0.0
    %209 = vmatprep.subr.mxu0 0.0
    %210 = vmatpush2.msra.mxu0 0.0
    %211 = vmatprep.subr.mxu0 0.0
    %212 = vmatpush2.msra.mxu0 0.0
    %213 = vmatprep.subr.mxu0 0.0
    %214 = vmatpush2.msra.mxu0 0.0
    %215 = vmatprep.subr.mxu0 0.0
    %216 = vmatpush2.msra.mxu0 0.0
    %217 = vmatprep.subr.mxu0 0.0
    %218 = vmatpush2.msra.mxu0 0.0
    %219 = vmatprep.mubr.f32.mxu0 0.0
    %220 = vmatmul.mubr.f32.gmra.mxu0 %v134
    %v221 = vpop.f32.mrf.mxu0
    %v222 = vadd.f32 %v154, %v221
    %v223 = vpop.f32.mrf.mxu0
    %224 = vdwg.mxu0
    %v225 = vtanh.pop %v222
    %v226 = vld [vmem:[#allocation5] sm:$0xff]
    %v227 = vld [vmem:[#allocation5 + $0x8] sm:$0xff]
    %v228 = vld [vmem:[#allocation5 + $0x10] sm:$0xff]
    %v229 = vld [vmem:[#allocation5 + $0x18] sm:$0xff]
    %v230 = vld [vmem:[#allocation5 + $0x20] sm:$0xff]
    %v231 = vld [vmem:[#allocation5 + $0x28] sm:$0xff]
    %v232 = vld [vmem:[#allocation5 + $0x30] sm:$0xff]
    %v233 = vld [vmem:[#allocation5 + $0x38] sm:$0xff]
    %v234 = vld [vmem:[#allocation5 + $0x40] sm:$0xff]
    %v235 = vld [vmem:[#allocation5 + $0x48] sm:$0xff]
    %v236 = vld [vmem:[#allocation5 + $0x50] sm:$0xff]
    %v237 = vld [vmem:[#allocation5 + $0x58] sm:$0xff]
    %v238 = vld [vmem:[#allocation5 + $0x60] sm:$0xff]
    %v239 = vld [vmem:[#allocation5 + $0x68] sm:$0xff]
    %v240 = vld [vmem:[#allocation5 + $0x70] sm:$0xff]
    %v241 = vld [vmem:[#allocation5 + $0x78] sm:$0xff]
    %v242 = vlaneseq
    %v243 = vshrl.u32 %v242, 7
    %v244 = vsub.s32 2, %v243
    %v245 = vrot.slane %v50, %v244
    %246 = vmatprep.subr.mxu0 0.0
    %247 = vmatpush1.msra.mxu0 %v241
    %248 = vmatprep.subr.mxu0 0.0
    %249 = vmatpush1.msra.mxu0 %v240
    %250 = vmatprep.subr.mxu0 0.0
    %251 = vmatpush1.msra.mxu0 %v239
    %252 = vmatprep.subr.mxu0 0.0
    %253 = vmatpush1.msra.mxu0 %v238
    %254 = vmatprep.subr.mxu0 0.0
    %255 = vmatpush1.msra.mxu0 %v237
    %256 = vmatprep.subr.mxu0 0.0
    %257 = vmatpush1.msra.mxu0 %v236
    %258 = vmatprep.subr.mxu0 0.0
    %259 = vmatpush1.msra.mxu0 %v235
    %260 = vmatprep.subr.mxu0 0.0
    %261 = vmatpush1.msra.mxu0 %v234
    %262 = vmatprep.subr.mxu0 0.0
    %263 = vmatpush1.msra.mxu0 %v233
    %264 = vmatprep.subr.mxu0 0.0
    %265 = vmatpush1.msra.mxu0 %v232
    %266 = vmatprep.subr.mxu0 0.0
    %267 = vmatpush1.msra.mxu0 %v231
    %268 = vmatprep.subr.mxu0 0.0
    %269 = vmatpush1.msra.mxu0 %v230
    %270 = vmatprep.subr.mxu0 0.0
    %271 = vmatpush1.msra.mxu0 %v229
    %272 = vmatprep.subr.mxu0 0.0
    %273 = vmatpush1.msra.mxu0 %v228
    %274 = vmatprep.subr.mxu0 0.0
    %275 = vmatpush1.msra.mxu0 %v227
    %276 = vmatprep.subr.mxu0 0.0
    %277 = vmatpush1.msra.mxu0 %v226
    %278 = vmatprep.subr.mxu0 0.0
    %279 = vmatpush2.msra.mxu0 0.0
    %280 = vmatprep.subr.mxu0 0.0
    %281 = vmatpush2.msra.mxu0 0.0
    %282 = vmatprep.subr.mxu0 0.0
    %283 = vmatpush2.msra.mxu0 0.0
    %284 = vmatprep.subr.mxu0 0.0
    %285 = vmatpush2.msra.mxu0 0.0
    %286 = vmatprep.subr.mxu0 0.0
    %287 = vmatpush2.msra.mxu0 0.0
    %288 = vmatprep.subr.mxu0 0.0
    %289 = vmatpush2.msra.mxu0 0.0
    %290 = vmatprep.subr.mxu0 0.0
    %291 = vmatpush2.msra.mxu0 0.0
    %292 = vmatprep.subr.mxu0 0.0
    %293 = vmatpush2.msra.mxu0 0.0
    %294 = vmatprep.subr.mxu0 0.0
    %295 = vmatpush2.msra.mxu0 0.0
    %296 = vmatprep.subr.mxu0 0.0
    %297 = vmatpush2.msra.mxu0 0.0
    %298 = vmatprep.subr.mxu0 0.0
    %299 = vmatpush2.msra.mxu0 0.0
    %300 = vmatprep.subr.mxu0 0.0
    %301 = vmatpush2.msra.mxu0 0.0
    %302 = vmatprep.subr.mxu0 0.0
    %303 = vmatpush2.msra.mxu0 0.0
    %304 = vmatprep.subr.mxu0 0.0
    %305 = vmatpush2.msra.mxu0 0.0
    %306 = vmatprep.subr.mxu0 0.0
    %307 = vmatpush2.msra.mxu0 0.0
    %308 = vmatprep.subr.mxu0 0.0
    %309 = vmatpush2.msra.mxu0 0.0
    %310 = vmatprep.mubr.f32.mxu0 0.0
    %311 = vmatmul.mubr.f32.gmra.mxu0 %v225
    %v312 = vpop.f32.mrf.mxu0
    %v313 = vadd.f32 %v245, %v312
    %v314 = vpop.f32.mrf.mxu0
    %315 = vdwg.mxu0
    %316 = vst [vmem:[#allocation7] sm:$0xff] %v313
    // Predicated region
    $region30: #{tpu_custom_call.1} parent=1 // pred_check
      _
    $region31: #{tpu_custom_call.1} parent=1 // pred_check_branch
      %318 = sbr.rel (0) target = $region33
    $region32: #{tpu_custom_call.1} parent=1 // pred_region
      %s320 = ssub.s32 128, 128
      %321 = vsyncadd [#allocation4], %s320
      %s323 = sshll.u32 [#allocation7], 4
      %s324 = int_to_ptr.vmem [resolvable:$true] %s323
      %326 = dma.vmem_to_hbm [thread:$0]  %s324, 128, %s5, [#allocation4]
    $region33: #{tpu_custom_call.1} parent=1 // pred_fallthru
      _
    // Predicated region
    $region34: #{tpu_custom_call.1} parent=1 // pred_check
      _
    $region35: #{tpu_custom_call.1} parent=1 // pred_check_branch
      %328 = sbr.rel (0) target = $region37
    $region36: #{tpu_custom_call.1} parent=1 // pred_region
      %329 = dma.done [#allocation4], 128
    $region37: #{tpu_custom_call.1} parent=1 // pred_fallthru
      _
    %330 = vsyncpa [#allocation3], 1
    %331 = vsyncpa [#allocation6], 1
    %332 = vsyncpa [#allocation4], 1

</llo_original>
